<compile_context>
chip_gen: v5e
topology: v5e:2x2
jax: 0.10.0
libtpu: 0.0.40
codegen_flags: <defaults>
</compile_context>

<pallas_src>
import math

import jax
import jax.numpy as jnp
from jax.experimental import pallas as pl
from jax.experimental.pallas import tpu as pltpu

_MAX_TILE_BYTES = 1 << 20  # ~1 MiB of input streamed per grid step


def _pick_block_rows(rows, d, itemsize, n_streams=1):
    """Largest row tile <= ~1 MiB total input; full `rows` if it already fits."""
    row_bytes = max(1, d * itemsize) * n_streams
    if rows * row_bytes <= _MAX_TILE_BYTES:
        return rows  # single block == full array dims (always a legal block shape)
    return max(8, (_MAX_TILE_BYTES // row_bytes) // 8 * 8)


def _task_rowsum(lv_scalar, x_ref, o_ref):
    """o[r, 0] = sum_d( exp(-lv) * x[r, d] + lv ) for one row block."""
    lv_vec = jnp.full((1, 1), lv_scalar, dtype=jnp.float32)  # splat once (VPU)
    prec = jnp.exp(-lv_vec)                                  # EUP transcendental
    x = x_ref[...].astype(jnp.float32)                       # f32 accumulation
    o_ref[...] = jnp.sum(prec * x + lv_vec, axis=-1, keepdims=True)


def _single_kernel(lv_ref, x_ref, o_ref):
    _task_rowsum(lv_ref[0], x_ref, o_ref)


def _fused_kernel(lv_ref, x0_ref, x1_ref, x2_ref, o0_ref, o1_ref, o2_ref):
    # Unrolled over the 3 tasks: all streams share one grid / one dispatch.
    for i, (x_ref, o_ref) in enumerate(
            ((x0_ref, o0_ref), (x1_ref, o1_ref), (x2_ref, o2_ref))):
        _task_rowsum(lv_ref[i], x_ref, o_ref)


def _weighted_rowsum(x2, log_var):
    """Per-row weighted sum of a single (rows, D) slab. Returns (rows,) f32."""
    rows, d = x2.shape
    br = _pick_block_rows(rows, d, x2.dtype.itemsize)
    n_blocks = pl.cdiv(rows, br)
    lv = jnp.asarray(log_var, dtype=jnp.float32).reshape(1)

    out = pl.pallas_call(
        _single_kernel,
        out_shape=jax.ShapeDtypeStruct((rows, 1), jnp.float32),
        grid=(n_blocks,),
        in_specs=[
            pl.BlockSpec(memory_space=pltpu.MemorySpace.SMEM),  # log_var scalar
            pl.BlockSpec((br, d), lambda r: (r, 0)),            # row block of x
        ],
        out_specs=pl.BlockSpec((br, 1), lambda r: (r, 0)),
        compiler_params=pltpu.CompilerParams(
            dimension_semantics=("parallel",)),
        cost_estimate=pl.CostEstimate(
            flops=int(3 * rows * d),
            transcendentals=int(n_blocks),
            bytes_accessed=int(rows * d * x2.dtype.itemsize + rows * 4 + 4)),
    )(lv, x2)
    return out[:, 0]


def _fused_weighted_rowsum(slabs, log_vars):
    """All three tasks share (rows, D)/dtype -> one fused pallas_call."""
    rows, d = slabs[0].shape
    itemsize = slabs[0].dtype.itemsize
    br = _pick_block_rows(rows, d, itemsize, n_streams=3)
    n_blocks = pl.cdiv(rows, br)
    lv = jnp.asarray(log_vars, dtype=jnp.float32).reshape(3)

    outs = pl.pallas_call(
        _fused_kernel,
        out_shape=tuple(jax.ShapeDtypeStruct((rows, 1), jnp.float32)
                        for _ in range(3)),
        grid=(n_blocks,),
        in_specs=[pl.BlockSpec(memory_space=pltpu.MemorySpace.SMEM)]  # log_vars
                 + [pl.BlockSpec((br, d), lambda r: (r, 0)) for _ in range(3)],
        out_specs=tuple(pl.BlockSpec((br, 1), lambda r: (r, 0)) for _ in range(3)),
        compiler_params=pltpu.CompilerParams(
            dimension_semantics=("parallel",)),
        cost_estimate=pl.CostEstimate(
            flops=int(3 * 3 * rows * d),
            transcendentals=int(3 * n_blocks),
            bytes_accessed=int(3 * rows * d * itemsize + 3 * rows * 4 + 12)),
    )(lv, *slabs)
    return [o[:, 0] for o in outs]


def multi_task_wrapper(losses, log_vars):
    """JAX/Pallas equivalent of MultiTaskWrapper.forward.

    losses:   sequence of 3 per-task loss tensors; the last axis is reduced,
              matching torch.sum(..., -1).
    log_vars: (task_num,) learnable log-variances (the nn.Parameter, zero-init
              in the PyTorch module), passed explicitly as an array.
    """
    log_vars = jnp.asarray(log_vars, dtype=jnp.float32)

    slabs, lead_shapes = [], []
    for loss in losses:
        x = jnp.asarray(loss)
        if x.ndim == 0:
            lead_shapes.append(())          # torch.sum(0-d, -1) keeps 0-d result
            slabs.append(x.reshape(1, 1))
        else:
            lead = x.shape[:-1]
            rows = math.prod(lead) if lead else 1
            lead_shapes.append(lead)
            slabs.append(x.reshape(rows, x.shape[-1]))

    same = (len(slabs) == 3
            and slabs[0].shape == slabs[1].shape == slabs[2].shape
            and slabs[0].dtype == slabs[1].dtype == slabs[2].dtype)
    if same:
        row_outs = _fused_weighted_rowsum(slabs, log_vars)
    else:
        row_outs = [_weighted_rowsum(s, log_vars[i]) for i, s in enumerate(slabs)]

    return tuple(ro.reshape(ls) for ro, ls in zip(row_outs, lead_shapes))


def _reference(losses, log_vars):
    outs = []
    for i, loss in enumerate(losses):
        precision = jnp.exp(-log_vars[i])
        outs.append(jnp.sum(precision * loss + log_vars[i], axis=-1))
    return tuple(outs)


if __name__ == "__main__":
    key = jax.random.PRNGKey(0)
    k1, k2, k3, k4 = jax.random.split(key, 4)
    # Three per-task loss tensors of shape (batch=2, hidden=32); the forward's
    # torch.sum(..., -1) implies at least one trailing reduction axis.
    losses = (
        jax.random.uniform(k1, (2, 32), dtype=jnp.float32),
        jax.random.uniform(k2, (2, 32), dtype=jnp.float32),
        jax.random.uniform(k3, (2, 32), dtype=jnp.float32),
    )
    # Learnable log-variances: zeros at init in the PyTorch module; use small
    # non-zero values here so the exp(-log_var) path is actually exercised.
    log_vars = 0.1 * jax.random.normal(k4, (3,), dtype=jnp.float32)

    out = jax.jit(multi_task_wrapper)(losses, log_vars)
    out = jax.block_until_ready(out)

    ref = _reference(losses, log_vars)
    for o, r in zip(out, ref):
        assert o.shape == r.shape, (o.shape, r.shape)
        assert jnp.allclose(o, r, rtol=1e-5, atol=1e-6), (o, r)
    print("KERNEL_OK")
</pallas_src>

<mosaic_0001>
module attributes {stable_mosaic.version = 11 : i64} {
  func.func @_fused_kernel(%arg0: i32, %arg1: memref<3xf32, #tpu.memory_space<smem>>, %arg2: memref<2x32xf32, #tpu.memory_space<vmem>>, %arg3: memref<2x32xf32, #tpu.memory_space<vmem>>, %arg4: memref<2x32xf32, #tpu.memory_space<vmem>>, %arg5: memref<2x1xf32, #tpu.memory_space<vmem>>, %arg6: memref<2x1xf32, #tpu.memory_space<vmem>>, %arg7: memref<2x1xf32, #tpu.memory_space<vmem>>) attributes {dimension_semantics = [#tpu.dimension_semantics<parallel>], iteration_bounds = array<i64: 1>, scalar_prefetch = 0 : i64, scratch_operands = 0 : i64, tpu.core_type = #tpu.core_type<tc>, window_params = [{transform_indices = @transform_0, window_bounds = array<i64: 3>}, {transform_indices = @transform_1, window_bounds = array<i64: 2, 32>}, {transform_indices = @transform_2, window_bounds = array<i64: 2, 32>}, {transform_indices = @transform_3, window_bounds = array<i64: 2, 32>}, {transform_indices = @transform_4, window_bounds = array<i64: 2, 1>}, {transform_indices = @transform_5, window_bounds = array<i64: 2, 1>}, {transform_indices = @transform_6, window_bounds = array<i64: 2, 1>}]} {
    %c0 = arith.constant 0 : index
    %0 = memref.load %arg1[%c0] : memref<3xf32, #tpu.memory_space<smem>>
    %1 = vector.broadcast %0 : f32 to vector<1x1xf32>
    %cst = arith.constant 0.000000e+00 : f32
    %2 = vector.broadcast %cst : f32 to vector<1x1xf32>
    %3 = arith.subf %2, %1 : vector<1x1xf32>
    %4 = math.exp %3 : vector<1x1xf32>
    %c0_0 = arith.constant 0 : index
    %c0_1 = arith.constant 0 : index
    %5 = vector.load %arg2[%c0_0, %c0_1] : memref<2x32xf32, #tpu.memory_space<vmem>>, vector<2x32xf32>
    %6 = vector.broadcast %4 : vector<1x1xf32> to vector<2x32xf32>
    %7 = arith.mulf %6, %5 : vector<2x32xf32>
    %8 = vector.broadcast %1 : vector<1x1xf32> to vector<2x32xf32>
    %9 = arith.addf %7, %8 : vector<2x32xf32>
    %cst_2 = arith.constant dense<0.000000e+00> : vector<2xf32>
    %10 = vector.multi_reduction <add>, %9, %cst_2 [1] : vector<2x32xf32> to vector<2xf32>
    %11 = vector.shape_cast %10 : vector<2xf32> to vector<2x1xf32>
    %c0_3 = arith.constant 0 : index
    %c0_4 = arith.constant 0 : index
    %12 = vector.load %arg5[%c0_3, %c0_4] : memref<2x1xf32, #tpu.memory_space<vmem>>, vector<2x1xf32>
    tpu.vector_store %arg5[%c0_3, %c0_4], %11 {strides = array<i32>} : memref<2x1xf32, #tpu.memory_space<vmem>>, vector<2x1xf32>,
    %c1 = arith.constant 1 : index
    %13 = memref.load %arg1[%c1] : memref<3xf32, #tpu.memory_space<smem>>
    %14 = vector.broadcast %13 : f32 to vector<1x1xf32>
    %cst_5 = arith.constant 0.000000e+00 : f32
    %15 = vector.broadcast %cst_5 : f32 to vector<1x1xf32>
    %16 = arith.subf %15, %14 : vector<1x1xf32>
    %17 = math.exp %16 : vector<1x1xf32>
    %c0_6 = arith.constant 0 : index
    %c0_7 = arith.constant 0 : index
    %18 = vector.load %arg3[%c0_6, %c0_7] : memref<2x32xf32, #tpu.memory_space<vmem>>, vector<2x32xf32>
    %19 = vector.broadcast %17 : vector<1x1xf32> to vector<2x32xf32>
    %20 = arith.mulf %19, %18 : vector<2x32xf32>
    %21 = vector.broadcast %14 : vector<1x1xf32> to vector<2x32xf32>
    %22 = arith.addf %20, %21 : vector<2x32xf32>
    %cst_8 = arith.constant dense<0.000000e+00> : vector<2xf32>
    %23 = vector.multi_reduction <add>, %22, %cst_8 [1] : vector<2x32xf32> to vector<2xf32>
    %24 = vector.shape_cast %23 : vector<2xf32> to vector<2x1xf32>
    %c0_9 = arith.constant 0 : index
    %c0_10 = arith.constant 0 : index
    %25 = vector.load %arg6[%c0_9, %c0_10] : memref<2x1xf32, #tpu.memory_space<vmem>>, vector<2x1xf32>
    tpu.vector_store %arg6[%c0_9, %c0_10], %24 {strides = array<i32>} : memref<2x1xf32, #tpu.memory_space<vmem>>, vector<2x1xf32>,
    %c2 = arith.constant 2 : index
    %26 = memref.load %arg1[%c2] : memref<3xf32, #tpu.memory_space<smem>>
    %27 = vector.broadcast %26 : f32 to vector<1x1xf32>
    %cst_11 = arith.constant 0.000000e+00 : f32
    %28 = vector.broadcast %cst_11 : f32 to vector<1x1xf32>
    %29 = arith.subf %28, %27 : vector<1x1xf32>
    %30 = math.exp %29 : vector<1x1xf32>
    %c0_12 = arith.constant 0 : index
    %c0_13 = arith.constant 0 : index
    %31 = vector.load %arg4[%c0_12, %c0_13] : memref<2x32xf32, #tpu.memory_space<vmem>>, vector<2x32xf32>
    %32 = vector.broadcast %30 : vector<1x1xf32> to vector<2x32xf32>
    %33 = arith.mulf %32, %31 : vector<2x32xf32>
    %34 = vector.broadcast %27 : vector<1x1xf32> to vector<2x32xf32>
    %35 = arith.addf %33, %34 : vector<2x32xf32>
    %cst_14 = arith.constant dense<0.000000e+00> : vector<2xf32>
    %36 = vector.multi_reduction <add>, %35, %cst_14 [1] : vector<2x32xf32> to vector<2xf32>
    %37 = vector.shape_cast %36 : vector<2xf32> to vector<2x1xf32>
    %c0_15 = arith.constant 0 : index
    %c0_16 = arith.constant 0 : index
    %38 = vector.load %arg7[%c0_15, %c0_16] : memref<2x1xf32, #tpu.memory_space<vmem>>, vector<2x1xf32>
    tpu.vector_store %arg7[%c0_15, %c0_16], %37 {strides = array<i32>} : memref<2x1xf32, #tpu.memory_space<vmem>>, vector<2x1xf32>,
    return
  }
  func.func @transform_0(%arg0: i32) -> i32 {
    %c0_i32 = arith.constant 0 : i32
    %c0_i32_0 = arith.constant 0 : i32
    return %c0_i32 : i32
  }
  func.func @transform_1(%arg0: i32) -> (i32, i32) {
    %c0_i32 = arith.constant 0 : i32
    %c0_i32_0 = arith.constant 0 : i32
    return %arg0, %c0_i32 : i32, i32
  }
  func.func @transform_2(%arg0: i32) -> (i32, i32) {
    %c0_i32 = arith.constant 0 : i32
    %c0_i32_0 = arith.constant 0 : i32
    return %arg0, %c0_i32 : i32, i32
  }
  func.func @transform_3(%arg0: i32) -> (i32, i32) {
    %c0_i32 = arith.constant 0 : i32
    %c0_i32_0 = arith.constant 0 : i32
    return %arg0, %c0_i32 : i32, i32
  }
  func.func @transform_4(%arg0: i32) -> (i32, i32) {
    %c0_i32 = arith.constant 0 : i32
    %c0_i32_0 = arith.constant 0 : i32
    return %arg0, %c0_i32 : i32, i32
  }
  func.func @transform_5(%arg0: i32) -> (i32, i32) {
    %c0_i32 = arith.constant 0 : i32
    %c0_i32_0 = arith.constant 0 : i32
    return %arg0, %c0_i32 : i32, i32
  }
  func.func @transform_6(%arg0: i32) -> (i32, i32) {
    %c0_i32 = arith.constant 0 : i32
    %c0_i32_0 = arith.constant 0 : i32
    return %arg0, %c0_i32 : i32, i32
  }
}

</mosaic_0001>

<llo_original>
// kernel: multi_task_wrapper.1
$region0: #{multi_task_wrapper.1}
  #allocation0 [shape = 'u32[]', space=smem, size = 0x4, offset = 0x4, fixed_abs, tag = 'smem constant byte address 0x4 - core index']
  #allocation1 [shape = 'u32[72,128]{1,0:T(1,128)}', space=vmem, size = 0x9000, scoped, tag = 'internal scratch']
  %s0 = inlined_call_operand.vmem [shape: f32[3], index: 0, kind: input, shape index: {}]
  %s1 = inlined_call_operand.hbm [shape: f32[2,32], index: 1, kind: input, shape index: {}]
  %s2 = inlined_call_operand.hbm [shape: f32[2,32], index: 2, kind: input, shape index: {}]
  %s3 = inlined_call_operand.hbm [shape: f32[2,32], index: 3, kind: input, shape index: {}]
  %s4 = inlined_call_operand.vmem [shape: f32[2,1], index: 4, kind: output, shape index: {0}]
  %s5 = inlined_call_operand.vmem [shape: f32[2,1], index: 5, kind: output, shape index: {1}]
  %s6 = inlined_call_operand.vmem [shape: f32[2,1], index: 6, kind: output, shape index: {2}]
  %7 = xla_tuple %s4, %s5, %s6
  %s8 = sld [smem:[#allocation0]]
  $region58: #{multi_task_wrapper.1} parent=0
    _
  %s10 = ssub.s32 1, %s8
  %s11 = scalar_select 0, %s10, %s8
  $region1: #{multi_task_wrapper.1} parent=0
    #allocation2 [shape = 'u8[512]{0}', space=smem, size = 0x200, scoped, tag = 'input window, operand 0, single buffered']
    #allocation3 [shape = 's32[1]{0}', space=sflag, size = 0x4, scoped, tag = 'scoped memory for multi_task_wrapper.1']
    #allocation4 [shape = 's32[1]{0}', space=sflag, size = 0x4, scoped, tag = 'scoped memory for multi_task_wrapper.1']
    #allocation5 [shape = 'u8[1024]{0}', space=vmem, size = 0x400, scoped, tag = 'input window, operand 1, single buffered']
    #allocation6 [shape = 'u8[1024]{0}', space=vmem, size = 0x400, scoped, tag = 'input window, operand 2, single buffered']
    #allocation7 [shape = 's32[1]{0}', space=sflag, size = 0x4, scoped, tag = 'scoped memory for multi_task_wrapper.1']
    #allocation8 [shape = 'u8[1024]{0}', space=vmem, size = 0x400, scoped, tag = 'input window, operand 3, single buffered']
    %12 = vsyncpa [#allocation4], 0
    %13 = vsyncpa [#allocation3], 0
    %14 = vsyncpa [#allocation7], 0
    // Predicated region
    $region2: #{multi_task_wrapper.1} parent=1 // pred_check
      _
    $region3: #{multi_task_wrapper.1} parent=1 // pred_check_branch
      %16 = sbr.rel (0) target = $region5
    $region4: #{multi_task_wrapper.1} parent=1 // pred_region
      %18 = vsyncadd [#allocation4], 0
      %s20 = sshll.u32 %s0, 4
      %s21 = int_to_ptr.vmem [resolvable:$true] %s20
      %23 = dma.vmem_to_smem %s21, 16, [#allocation2], [#allocation4]
    $region5: #{multi_task_wrapper.1} parent=1 // pred_fallthru
      _
    // Predicated region
    $region6: #{multi_task_wrapper.1} parent=1 // pred_check
      _
    $region7: #{multi_task_wrapper.1} parent=1 // pred_check_branch
      %25 = sbr.rel (0) target = $region9
    $region8: #{multi_task_wrapper.1} parent=1 // pred_region
      %27 = vsyncadd [#allocation3], 0
      %s29 = sshll.u32 %s1, 4
      %s30 = int_to_ptr.hbm [resolvable:$true] %s29
      %s31 = sshll.u32 [#allocation5], 4
      %s32 = int_to_ptr.vmem [resolvable:$true] %s31
      %34 = dma.hbm_to_vmem [thread:$0]  %s30, 32, %s32, [#allocation3]
    $region9: #{multi_task_wrapper.1} parent=1 // pred_fallthru
      _
    // Predicated region
    $region10: #{multi_task_wrapper.1} parent=1 // pred_check
      _
    $region11: #{multi_task_wrapper.1} parent=1 // pred_check_branch
      %36 = sbr.rel (0) target = $region13
    $region12: #{multi_task_wrapper.1} parent=1 // pred_region
      %38 = vsyncadd [#allocation7], 0
      %s40 = sshll.u32 %s2, 4
      %s41 = int_to_ptr.hbm [resolvable:$true] %s40
      %s42 = sshll.u32 [#allocation6], 4
      %s43 = int_to_ptr.vmem [resolvable:$true] %s42
      %45 = dma.hbm_to_vmem [thread:$0]  %s41, 32, %s43, [#allocation7]
    $region13: #{multi_task_wrapper.1} parent=1 // pred_fallthru
      _
    // Predicated region
    $region14: #{multi_task_wrapper.1} parent=1 // pred_check
      _
    $region15: #{multi_task_wrapper.1} parent=1 // pred_check_branch
      %47 = sbr.rel (0) target = $region17
    $region16: #{multi_task_wrapper.1} parent=1 // pred_region
      %49 = vsyncadd [#allocation7], 0
      %s51 = sshll.u32 %s3, 4
      %s52 = int_to_ptr.hbm [resolvable:$true] %s51
      %s53 = sshll.u32 [#allocation8], 4
      %s54 = int_to_ptr.vmem [resolvable:$true] %s53
      %56 = dma.hbm_to_vmem [thread:$0]  %s52, 32, %s54, [#allocation7]
    $region17: #{multi_task_wrapper.1} parent=1 // pred_fallthru
      _
    // Predicated region
    $region18: #{multi_task_wrapper.1} parent=1 // pred_check
      _
    $region19: #{multi_task_wrapper.1} parent=1 // pred_check_branch
      %58 = sbr.rel (0) target = $region21
    $region20: #{multi_task_wrapper.1} parent=1 // pred_region
      %60 = dma.done [#allocation4], 16
    $region21: #{multi_task_wrapper.1} parent=1 // pred_fallthru
      _
    // Predicated region
    $region22: #{multi_task_wrapper.1} parent=1 // pred_check
      _
    $region23: #{multi_task_wrapper.1} parent=1 // pred_check_branch
      %62 = sbr.rel (0) target = $region25
    $region24: #{multi_task_wrapper.1} parent=1 // pred_region
      %64 = dma.done [#allocation3], 32
    $region25: #{multi_task_wrapper.1} parent=1 // pred_fallthru
      _
    // Predicated region
    $region26: #{multi_task_wrapper.1} parent=1 // pred_check
      _
    $region27: #{multi_task_wrapper.1} parent=1 // pred_check_branch
      %66 = sbr.rel (0) target = $region29
    $region28: #{multi_task_wrapper.1} parent=1 // pred_region
      %68 = dma.done [#allocation7], 32
    $region29: #{multi_task_wrapper.1} parent=1 // pred_fallthru
      _
    // Predicated region
    $region30: #{multi_task_wrapper.1} parent=1 // pred_check
      _
    $region31: #{multi_task_wrapper.1} parent=1 // pred_check_branch
      %70 = sbr.rel (0) target = $region33
    $region32: #{multi_task_wrapper.1} parent=1 // pred_region
      %72 = dma.done [#allocation7], 32
    $region33: #{multi_task_wrapper.1} parent=1 // pred_fallthru
      _
    %73 = sfence
    %s74 = sld [smem:[#allocation2]]
    %v75 = vstv %s74
    %v76 = vsub.f32 0.0, %v75
    %v77 = vmul.f32 %v76, 1.442695
    %v78 = vpow.pop %v77
    %v79 = vld [vmem:[#allocation5] sm:$0x3]
    %v80 = vmul.f32 %v78, %v79
    %v81 = vadd.f32 %v80, %v75
    %vm82 = vcmask 254976
    %v83 = vsel %vm82, %v81, 0.0
    %84 = vadd.xlane.f32.xlu0 %v83
    %v85 = vpop.xlane.xlu0 %84
    %vm86 = vcmask 1024
    %87 = vst.msk [vmem:[%s4] sm:$0x3] %vm86, %v85
    %s88 = sld [smem:[#allocation2 + $0x1]]
    %v89 = vstv %s88
    %v90 = vsub.f32 0.0, %v89
    %v91 = vmul.f32 %v90, 1.442695
    %v92 = vpow.pop %v91
    %v93 = vld [vmem:[#allocation6] sm:$0x3]
    %v94 = vmul.f32 %v92, %v93
    %v95 = vadd.f32 %v94, %v89
    %v96 = vsel %vm82, %v95, 0.0
    %97 = vadd.xlane.f32.xlu0 %v96
    %v98 = vpop.xlane.xlu0 %97
    %99 = vst.msk [vmem:[%s5] sm:$0x3] %vm86, %v98
    %s100 = sld [smem:[#allocation2 + $0x2]]
    %v101 = vstv %s100
    %v102 = vsub.f32 0.0, %v101
    %v103 = vmul.f32 %v102, 1.442695
    %v104 = vpow.pop %v103
    %v105 = vld [vmem:[#allocation8] sm:$0x3]
    %v106 = vmul.f32 %v104, %v105
    %v107 = vadd.f32 %v106, %v101
    %v108 = vsel %vm82, %v107, 0.0
    %109 = vadd.xlane.f32.xlu0 %v108
    %v110 = vpop.xlane.xlu0 %109
    %111 = vst.msk [vmem:[%s6] sm:$0x3] %vm86, %v110
    // Predicated region
    $region34: #{multi_task_wrapper.1} parent=1 // pred_check
      _
    $region35: #{multi_task_wrapper.1} parent=1 // pred_check_branch
      %113 = sbr.rel (0) target = $region37
    $region36: #{multi_task_wrapper.1} parent=1 // pred_region
      _
    $region37: #{multi_task_wrapper.1} parent=1 // pred_fallthru
      _
    // Predicated region
    $region38: #{multi_task_wrapper.1} parent=1 // pred_check
      _
    $region39: #{multi_task_wrapper.1} parent=1 // pred_check_branch
      %115 = sbr.rel (0) target = $region41
    $region40: #{multi_task_wrapper.1} parent=1 // pred_region
      _
    $region41: #{multi_task_wrapper.1} parent=1 // pred_fallthru
      _
    // Predicated region
    $region42: #{multi_task_wrapper.1} parent=1 // pred_check
      _
    $region43: #{multi_task_wrapper.1} parent=1 // pred_check_branch
      %117 = sbr.rel (0) target = $region45
    $region44: #{multi_task_wrapper.1} parent=1 // pred_region
      _
    $region45: #{multi_task_wrapper.1} parent=1 // pred_fallthru
      _
    // Predicated region
    $region46: #{multi_task_wrapper.1} parent=1 // pred_check
      _
    $region47: #{multi_task_wrapper.1} parent=1 // pred_check_branch
      %119 = sbr.rel (0) target = $region49
    $region48: #{multi_task_wrapper.1} parent=1 // pred_region
      _
    $region49: #{multi_task_wrapper.1} parent=1 // pred_fallthru
      _
    // Predicated region
    $region50: #{multi_task_wrapper.1} parent=1 // pred_check
      _
    $region51: #{multi_task_wrapper.1} parent=1 // pred_check_branch
      %121 = sbr.rel (0) target = $region53
    $region52: #{multi_task_wrapper.1} parent=1 // pred_region
      _
    $region53: #{multi_task_wrapper.1} parent=1 // pred_fallthru
      _
    // Predicated region
    $region54: #{multi_task_wrapper.1} parent=1 // pred_check
      _
    $region55: #{multi_task_wrapper.1} parent=1 // pred_check_branch
      %123 = sbr.rel (0) target = $region57
    $region56: #{multi_task_wrapper.1} parent=1 // pred_region
      _
    $region57: #{multi_task_wrapper.1} parent=1 // pred_fallthru
      _
    %124 = vsyncpa [#allocation3], 1
    %125 = vsyncpa [#allocation7], 1
    %126 = vsyncpa [#allocation4], 1

</llo_original>
